<compile_context>
chip_gen: v7x
topology: tpu7x:2x2x1
jax: 0.10.0
libtpu: 0.0.40
codegen_flags: <defaults>
</compile_context>

<pallas_src>
import functools

import jax
import jax.numpy as jnp
from jax.experimental import pallas as pl
from jax.experimental.pallas import tpu as pltpu

LOG_STD_MAX = 2.0
LOG_STD_MIN = -5.0


def _round_up(x: int, m: int) -> int:
    return ((x + m - 1) // m) * m


def _pad2(a, rows: int, cols: int):
    return jnp.pad(a, ((0, rows - a.shape[0]), (0, cols - a.shape[1])))


def _default_elementwise_dtype():
    """bf16 elementwise on chips with a bf16 VPU/EUP (v6e/v7x); f32 otherwise (v5e)."""
    try:
        kind = jax.devices()[0].device_kind.lower()
    except Exception:  # pragma: no cover - defensive
        return jnp.float32
    if "v6" in kind or "v7" in kind:
        return jnp.bfloat16
    return jnp.float32


def _gaussian_policy_kernel(obs_ref, w1_ref, b1_ref, w2_ref, b2_ref,
                            w3_ref, b3_ref, mean_ref, *, ew_dtype):
    # obs is already bf16 (cast once on the host-side padding pass).
    # MXU matmuls accumulate in f32; bias/ReLU/tanh run in `ew_dtype`.
    x = obs_ref[...]
    h = jnp.dot(x, w1_ref[...], preferred_element_type=jnp.float32)
    h = jnp.maximum(h.astype(ew_dtype) + b1_ref[...], 0.0).astype(jnp.bfloat16)
    h = jnp.dot(h, w2_ref[...], preferred_element_type=jnp.float32)
    h = jnp.maximum(h.astype(ew_dtype) + b2_ref[...], 0.0).astype(jnp.bfloat16)
    o = jnp.dot(h, w3_ref[...], preferred_element_type=jnp.float32)
    mean_ref[...] = jnp.tanh(o.astype(ew_dtype) + b3_ref[...]).astype(mean_ref.dtype)


def prepare_params(params, *, elementwise_dtype=None):
    """One-time weight padding / bf16 casting + std computation (hoisted out of forward)."""
    if elementwise_dtype is None:
        elementwise_dtype = _default_elementwise_dtype()

    w1, b1, w2, b2, w3, b3, log_std = params
    state_dim, hidden_dim = w1.shape
    act_dim = w3.shape[1]

    # obs feature axis: only a tiny multiple-of-8 alignment pad (NOT 128).
    S = _round_up(state_dim, 8)
    # hidden axis: padded once; weights are resident so this is one-time traffic.
    H = _round_up(hidden_dim, 128)
    # action axis: kept at full (unpadded) extent -> minimal output writeback.
    A = act_dim

    w1_p = _pad2(w1, S, H).astype(jnp.bfloat16)
    w2_p = _pad2(w2, H, H).astype(jnp.bfloat16)
    w3_p = _pad2(w3, H, A).astype(jnp.bfloat16)
    b1_p = jnp.pad(b1, (0, H - hidden_dim)).reshape(1, H).astype(elementwise_dtype)
    b2_p = jnp.pad(b2, (0, H - hidden_dim)).reshape(1, H).astype(elementwise_dtype)
    b3_p = b3.reshape(1, A).astype(elementwise_dtype)

    # Batch-independent std / scale_tril: computed once in plain JAX.
    std = jnp.exp(jnp.clip(log_std, LOG_STD_MIN, LOG_STD_MAX))
    scale_tril = jnp.diag(std)

    return dict(
        w1=w1_p, b1=b1_p, w2=w2_p, b2=b2_p, w3=w3_p, b3=b3_p,
        scale_tril=scale_tril,
        dims=(state_dim, hidden_dim, act_dim),
        padded=(S, H, A),
        elementwise_dtype=elementwise_dtype,
    )


def gaussian_policy_forward(obs, prepared, *, tile_b: int = 1024,
                            single_buffer_weights: bool = False):
    """Returns (mean, scale_tril) of the MultivariateNormal produced by forward()."""
    state_dim, hidden_dim, act_dim = prepared["dims"]
    S, H, A = prepared["padded"]
    batch = obs.shape[0]

    # Batch tile: multiple of 16 (bf16 sublane packing); large default (mem-bound kernel).
    tb = min(tile_b, _round_up(batch, 16))
    B = _round_up(batch, tb)
    grid = (B // tb,)

    # Pad rows + feature alignment and cast to bf16 in one pass (the pad already
    # materializes a copy, so the cast is free here and halves obs HBM traffic).
    obs_p = _pad2(obs, B, S).astype(jnp.bfloat16)

    def _const_spec(shape):
        # Block-invariant operands (weights / biases) stay resident in VMEM.
        if single_buffer_weights:
            # Single-buffer the resident operands (v7x large-hidden_dim configs).
            return pl.BlockSpec(shape, lambda i: (0, 0), pipeline_mode=pl.Buffered(1))
        return pl.BlockSpec(shape, lambda i: (0, 0))

    flops = 2 * B * (S * H + H * H + H * A)
    bytes_accessed = (obs_p.size * 2
                      + (prepared["w1"].size + prepared["w2"].size + prepared["w3"].size) * 2
                      + (prepared["b1"].size + prepared["b2"].size + prepared["b3"].size)
                      * jnp.dtype(prepared["elementwise_dtype"]).itemsize
                      + B * A * 4)

    kernel = functools.partial(_gaussian_policy_kernel,
                               ew_dtype=prepared["elementwise_dtype"])

    mean_p = pl.pallas_call(
        kernel,
        out_shape=jax.ShapeDtypeStruct((B, A), jnp.float32),
        grid=grid,
        in_specs=[
            pl.BlockSpec((tb, S), lambda i: (i, 0)),   # obs tile (pipelined over batch)
            _const_spec((S, H)),                       # W1 resident in VMEM
            _const_spec((1, H)),                       # b1
            _const_spec((H, H)),                       # W2
            _const_spec((1, H)),                       # b2
            _const_spec((H, A)),                       # W3
            _const_spec((1, A)),                       # b3
        ],
        out_specs=pl.BlockSpec((tb, A), lambda i: (i, 0)),
        compiler_params=pltpu.CompilerParams(
            dimension_semantics=("parallel",)),
        cost_estimate=pl.CostEstimate(
            flops=flops, transcendentals=B * A, bytes_accessed=int(bytes_accessed)),
    )(obs_p, prepared["w1"], prepared["b1"], prepared["w2"], prepared["b2"],
      prepared["w3"], prepared["b3"])

    # Action axis is unpadded; only slice rows if the batch needed padding.
    mean = mean_p if B == batch else mean_p[:batch]
    return mean, prepared["scale_tril"]


def init_params(key, state_dim, hidden_dim, act_dim):
    """Deterministic synthetic init. Weights stored as (in_dim, out_dim)."""
    ks = jax.random.split(key, 6)

    def lin(kw, kb, d_in, d_out):
        bound = 1.0 / jnp.sqrt(d_in)
        w = jax.random.uniform(kw, (d_in, d_out), jnp.float32, -bound, bound)
        b = jax.random.uniform(kb, (d_out,), jnp.float32, -bound, bound)
        return w, b

    w1, b1 = lin(ks[0], ks[1], state_dim, hidden_dim)
    w2, b2 = lin(ks[2], ks[3], hidden_dim, hidden_dim)
    w3, b3 = lin(ks[4], ks[5], hidden_dim, act_dim)
    log_std = jnp.zeros((act_dim,), jnp.float32)  # nn.Parameter(torch.zeros(act_dim))
    return (w1, b1, w2, b2, w3, b3, log_std)


if __name__ == "__main__":
    # Small shapes consistent with the module: obs (batch, state_dim).
    batch, state_dim, hidden_dim, act_dim = 8, 16, 32, 8
    max_action = 1.0  # unused in forward(); used only in act()

    key = jax.random.PRNGKey(0)
    k_obs, k_params = jax.random.split(key)
    obs = jax.random.normal(k_obs, (batch, state_dim), jnp.float32)
    params = init_params(k_params, state_dim, hidden_dim, act_dim)

    # One-time weight preparation (padding / bf16 cast / std) hoisted out of forward.
    prepared = prepare_params(params)

    mean, scale_tril = gaussian_policy_forward(obs, prepared)
    jax.block_until_ready((mean, scale_tril))

    # Pure-JAX f32 reference check of the same forward pass.
    w1, b1, w2, b2, w3, b3, log_std = params
    h = jnp.maximum(obs @ w1 + b1, 0.0)
    h = jnp.maximum(h @ w2 + b2, 0.0)
    ref_mean = jnp.tanh(h @ w3 + b3)
    ref_tril = jnp.diag(jnp.exp(jnp.clip(log_std, LOG_STD_MIN, LOG_STD_MAX)))
    # bf16 matmul operands (f32 accumulate) + bf16 elementwise on v6e/v7x
    # -> loosened tolerance on mean.
    assert mean.shape == (batch, act_dim)
    assert jnp.allclose(mean, ref_mean, atol=3e-2), "mean mismatch"
    assert jnp.allclose(scale_tril, ref_tril, atol=1e-6), "scale_tril mismatch"

    print("KERNEL_OK")
</pallas_src>

<mosaic_0001>
module attributes {stable_mosaic.version = 11 : i64} {
  func.func @_gaussian_policy_kernel(%arg0: i32, %arg1: memref<16x16xbf16, #tpu.memory_space<vmem>>, %arg2: memref<16x128xbf16, #tpu.memory_space<vmem>>, %arg3: memref<1x128xf32, #tpu.memory_space<vmem>>, %arg4: memref<128x128xbf16, #tpu.memory_space<vmem>>, %arg5: memref<1x128xf32, #tpu.memory_space<vmem>>, %arg6: memref<128x8xbf16, #tpu.memory_space<vmem>>, %arg7: memref<1x8xf32, #tpu.memory_space<vmem>>, %arg8: memref<16x8xf32, #tpu.memory_space<vmem>>) attributes {dimension_semantics = [#tpu.dimension_semantics<parallel>], iteration_bounds = array<i64: 1>, scalar_prefetch = 0 : i64, scratch_operands = 0 : i64, tpu.core_type = #tpu.core_type<tc>, window_params = [{transform_indices = @transform_0, window_bounds = array<i64: 16, 16>}, {pipeline_mode = #tpu.pipeline_mode<synchronous>, transform_indices = @transform_1, window_bounds = array<i64: 16, 128>}, {pipeline_mode = #tpu.pipeline_mode<synchronous>, transform_indices = @transform_2, window_bounds = array<i64: 1, 128>}, {pipeline_mode = #tpu.pipeline_mode<synchronous>, transform_indices = @transform_3, window_bounds = array<i64: 128, 128>}, {pipeline_mode = #tpu.pipeline_mode<synchronous>, transform_indices = @transform_4, window_bounds = array<i64: 1, 128>}, {pipeline_mode = #tpu.pipeline_mode<synchronous>, transform_indices = @transform_5, window_bounds = array<i64: 128, 8>}, {pipeline_mode = #tpu.pipeline_mode<synchronous>, transform_indices = @transform_6, window_bounds = array<i64: 1, 8>}, {transform_indices = @transform_7, window_bounds = array<i64: 16, 8>}]} {
    %c0 = arith.constant 0 : index
    %c0_0 = arith.constant 0 : index
    %0 = vector.load %arg1[%c0, %c0_0] : memref<16x16xbf16, #tpu.memory_space<vmem>>, vector<16x16xbf16>
    %c0_1 = arith.constant 0 : index
    %c0_2 = arith.constant 0 : index
    %1 = vector.load %arg2[%c0_1, %c0_2] : memref<16x128xbf16, #tpu.memory_space<vmem>>, vector<16x128xbf16>
    %cst = arith.constant dense<0.000000e+00> : vector<16x128xf32>
    %2 = tpu.matmul %0, %1, %cst {dimension_numbers = #tpu.dot_dimension_numbers<[1], [0], [0], [1], [0, 0, 1, 1], [], []>} : vector<16x16xbf16>, vector<16x128xbf16>, vector<16x128xf32> -> vector<16x128xf32>
    %c0_3 = arith.constant 0 : index
    %c0_4 = arith.constant 0 : index
    %3 = vector.load %arg3[%c0_3, %c0_4] : memref<1x128xf32, #tpu.memory_space<vmem>>, vector<1x128xf32>
    %4 = vector.broadcast %3 : vector<1x128xf32> to vector<16x128xf32>
    %5 = arith.addf %2, %4 : vector<16x128xf32>
    %cst_5 = arith.constant 0.000000e+00 : f32
    %6 = vector.broadcast %cst_5 : f32 to vector<16x128xf32>
    %7 = arith.maximumf %5, %6 : vector<16x128xf32>
    %8 = arith.truncf %7 : vector<16x128xf32> to vector<16x128xbf16>
    %c0_6 = arith.constant 0 : index
    %c0_7 = arith.constant 0 : index
    %9 = vector.load %arg4[%c0_6, %c0_7] : memref<128x128xbf16, #tpu.memory_space<vmem>>, vector<128x128xbf16>
    %cst_8 = arith.constant dense<0.000000e+00> : vector<16x128xf32>
    %10 = tpu.matmul %8, %9, %cst_8 {dimension_numbers = #tpu.dot_dimension_numbers<[1], [0], [0], [1], [0, 0, 1, 1], [], []>} : vector<16x128xbf16>, vector<128x128xbf16>, vector<16x128xf32> -> vector<16x128xf32>
    %c0_9 = arith.constant 0 : index
    %c0_10 = arith.constant 0 : index
    %11 = vector.load %arg5[%c0_9, %c0_10] : memref<1x128xf32, #tpu.memory_space<vmem>>, vector<1x128xf32>
    %12 = vector.broadcast %11 : vector<1x128xf32> to vector<16x128xf32>
    %13 = arith.addf %10, %12 : vector<16x128xf32>
    %cst_11 = arith.constant 0.000000e+00 : f32
    %14 = vector.broadcast %cst_11 : f32 to vector<16x128xf32>
    %15 = arith.maximumf %13, %14 : vector<16x128xf32>
    %16 = arith.truncf %15 : vector<16x128xf32> to vector<16x128xbf16>
    %c0_12 = arith.constant 0 : index
    %c0_13 = arith.constant 0 : index
    %17 = vector.load %arg6[%c0_12, %c0_13] : memref<128x8xbf16, #tpu.memory_space<vmem>>, vector<128x8xbf16>
    %cst_14 = arith.constant dense<0.000000e+00> : vector<16x8xf32>
    %18 = tpu.matmul %16, %17, %cst_14 {dimension_numbers = #tpu.dot_dimension_numbers<[1], [0], [0], [1], [0, 0, 1, 1], [], []>} : vector<16x128xbf16>, vector<128x8xbf16>, vector<16x8xf32> -> vector<16x8xf32>
    %c0_15 = arith.constant 0 : index
    %c0_16 = arith.constant 0 : index
    %19 = vector.load %arg7[%c0_15, %c0_16] : memref<1x8xf32, #tpu.memory_space<vmem>>, vector<1x8xf32>
    %20 = vector.broadcast %19 : vector<1x8xf32> to vector<16x8xf32>
    %21 = arith.addf %18, %20 : vector<16x8xf32>
    %22 = math.tanh %21 : vector<16x8xf32>
    %c0_17 = arith.constant 0 : index
    %c0_18 = arith.constant 0 : index
    %23 = vector.load %arg8[%c0_17, %c0_18] : memref<16x8xf32, #tpu.memory_space<vmem>>, vector<16x8xf32>
    tpu.vector_store %arg8[%c0_17, %c0_18], %22 {strides = array<i32>} : memref<16x8xf32, #tpu.memory_space<vmem>>, vector<16x8xf32>,
    return
  }
  func.func @transform_0(%arg0: i32) -> (i32, i32) {
    %c0_i32 = arith.constant 0 : i32
    %c0_i32_0 = arith.constant 0 : i32
    return %arg0, %c0_i32 : i32, i32
  }
  func.func @transform_1(%arg0: i32) -> (i32, i32) {
    %c0_i32 = arith.constant 0 : i32
    %c0_i32_0 = arith.constant 0 : i32
    %c0_i32_1 = arith.constant 0 : i32
    return %c0_i32, %c0_i32_0 : i32, i32
  }
  func.func @transform_2(%arg0: i32) -> (i32, i32) {
    %c0_i32 = arith.constant 0 : i32
    %c0_i32_0 = arith.constant 0 : i32
    %c0_i32_1 = arith.constant 0 : i32
    return %c0_i32, %c0_i32_0 : i32, i32
  }
  func.func @transform_3(%arg0: i32) -> (i32, i32) {
    %c0_i32 = arith.constant 0 : i32
    %c0_i32_0 = arith.constant 0 : i32
    %c0_i32_1 = arith.constant 0 : i32
    return %c0_i32, %c0_i32_0 : i32, i32
  }
  func.func @transform_4(%arg0: i32) -> (i32, i32) {
    %c0_i32 = arith.constant 0 : i32
    %c0_i32_0 = arith.constant 0 : i32
    %c0_i32_1 = arith.constant 0 : i32
    return %c0_i32, %c0_i32_0 : i32, i32
  }
  func.func @transform_5(%arg0: i32) -> (i32, i32) {
    %c0_i32 = arith.constant 0 : i32
    %c0_i32_0 = arith.constant 0 : i32
    %c0_i32_1 = arith.constant 0 : i32
    return %c0_i32, %c0_i32_0 : i32, i32
  }
  func.func @transform_6(%arg0: i32) -> (i32, i32) {
    %c0_i32 = arith.constant 0 : i32
    %c0_i32_0 = arith.constant 0 : i32
    %c0_i32_1 = arith.constant 0 : i32
    return %c0_i32, %c0_i32_0 : i32, i32
  }
  func.func @transform_7(%arg0: i32) -> (i32, i32) {
    %c0_i32 = arith.constant 0 : i32
    %c0_i32_0 = arith.constant 0 : i32
    return %arg0, %c0_i32 : i32, i32
  }
}

</mosaic_0001>

<llo_original>
// kernel: tpu_custom_call.1
$region0: #{tpu_custom_call.1}
  #allocation0 [shape = 'u32[]', space=smem, size = 0x4, offset = 0x4, fixed_abs, tag = 'smem constant byte address 0x4 - core index']
  #allocation1 [shape = 'u32[144,128]{1,0:T(1,128)}', space=vmem, size = 0x12000, scoped, tag = 'internal scratch']
  %s0 = inlined_call_operand.vmem [shape: bf16[16,16], index: 0, kind: input, shape index: {}]
  %s1 = inlined_call_operand.hbm [shape: bf16[16,128], index: 1, kind: input, shape index: {}]
  %s2 = inlined_call_operand.vmem [shape: f32[1,128], index: 2, kind: input, shape index: {}]
  %s3 = inlined_call_operand.vmem [shape: bf16[128,128], index: 3, kind: input, shape index: {}]
  %s4 = inlined_call_operand.vmem [shape: f32[1,128], index: 4, kind: input, shape index: {}]
  %s5 = inlined_call_operand.vmem [shape: bf16[128,8], index: 5, kind: input, shape index: {}]
  %s6 = inlined_call_operand.vmem [shape: f32[1,8], index: 6, kind: input, shape index: {}]
  %s7 = inlined_call_operand.vmem [shape: f32[16,8], index: 7, kind: output, shape index: {}]
  %s8 = sld [smem:[#allocation0]]
  $region42: #{tpu_custom_call.1} parent=0
    _
  %s10 = ssub.s32 1, %s8
  %s11 = scalar_select 0, %s10, %s8
  $region1: #{tpu_custom_call.1} parent=0
    #allocation2 [shape = 'u8[4096]{0}', space=vmem, size = 0x1000, scoped, tag = 'input window, operand 1, single buffered']
    #allocation3 [shape = 's32[1]{0}', space=sflag, size = 0x4, scoped, tag = 'scoped memory for tpu_custom_call.1']
    %12 = vsyncpa [#allocation3], 0
    // Predicated region
    $region2: #{tpu_custom_call.1} parent=1 // pred_check
      _
    $region3: #{tpu_custom_call.1} parent=1 // pred_check_branch
      %14 = sbr.rel (0) target = $region5
    $region4: #{tpu_custom_call.1} parent=1 // pred_region
      _
    $region5: #{tpu_custom_call.1} parent=1 // pred_fallthru
      _
    // Predicated region
    $region6: #{tpu_custom_call.1} parent=1 // pred_check
      _
    $region7: #{tpu_custom_call.1} parent=1 // pred_check_branch
      %16 = sbr.rel (0) target = $region9
    $region8: #{tpu_custom_call.1} parent=1 // pred_region
      %s18 = ssub.s32 128, 128
      %19 = vsyncadd [#allocation3], %s18
      %s20 = sshll.u32 [#allocation2], 4
      %s21 = int_to_ptr.vmem [resolvable:$true] %s20
      %26 = dma.hbm_to_vmem [thread:$0]  %s1, 128, %s21, [#allocation3], 64, 64, 4
    $region9: #{tpu_custom_call.1} parent=1 // pred_fallthru
      _
    // Predicated region
    $region10: #{tpu_custom_call.1} parent=1 // pred_check
      _
    $region11: #{tpu_custom_call.1} parent=1 // pred_check_branch
      %28 = sbr.rel (0) target = $region13
    $region12: #{tpu_custom_call.1} parent=1 // pred_region
      _
    $region13: #{tpu_custom_call.1} parent=1 // pred_fallthru
      _
    // Predicated region
    $region14: #{tpu_custom_call.1} parent=1 // pred_check
      _
    $region15: #{tpu_custom_call.1} parent=1 // pred_check_branch
      %30 = sbr.rel (0) target = $region17
    $region16: #{tpu_custom_call.1} parent=1 // pred_region
      _
    $region17: #{tpu_custom_call.1} parent=1 // pred_fallthru
      _
    // Predicated region
    $region18: #{tpu_custom_call.1} parent=1 // pred_check
      _
    $region19: #{tpu_custom_call.1} parent=1 // pred_check_branch
      %32 = sbr.rel (0) target = $region21
    $region20: #{tpu_custom_call.1} parent=1 // pred_region
      _
    $region21: #{tpu_custom_call.1} parent=1 // pred_fallthru
      _
    // Predicated region
    $region22: #{tpu_custom_call.1} parent=1 // pred_check
      _
    $region23: #{tpu_custom_call.1} parent=1 // pred_check_branch
      %34 = sbr.rel (0) target = $region25
    $region24: #{tpu_custom_call.1} parent=1 // pred_region
      _
    $region25: #{tpu_custom_call.1} parent=1 // pred_fallthru
      _
    // Predicated region
    $region26: #{tpu_custom_call.1} parent=1 // pred_check
      _
    $region27: #{tpu_custom_call.1} parent=1 // pred_check_branch
      %36 = sbr.rel (0) target = $region29
    $region28: #{tpu_custom_call.1} parent=1 // pred_region
      _
    $region29: #{tpu_custom_call.1} parent=1 // pred_fallthru
      _
    // Predicated region
    $region30: #{tpu_custom_call.1} parent=1 // pred_check
      _
    $region31: #{tpu_custom_call.1} parent=1 // pred_check_branch
      %38 = sbr.rel (0) target = $region33
    $region32: #{tpu_custom_call.1} parent=1 // pred_region
      %39 = dma.done [#allocation3], 128
    $region33: #{tpu_custom_call.1} parent=1 // pred_fallthru
      _
    %v41 = vld [vmem:[%s0] sm:$0xf]
    %v42 = vld [vmem:[%s0 + $0x4] sm:$0xf]
    %v43 = vld [vmem:[#allocation2] sm:$0xf]
    %v44 = vld [vmem:[#allocation2 + $0x4] sm:$0xf]
    %v45 = vld [vmem:[%s2] sm:$0x1]
    %v47 = vlaneseq
    %v48 = vshrl.u32 %v47, 7
    %v49 = vsub.s32 0, %v48
    %v50 = vrot.slane %v45, %v49
    %v54 = vunpack.c.l.b16 %v41
    %v55 = vunpack.c.l.b16 %v42
    %v56 = vpack.c.b16 %v55, %v54
    %v59 = vunpack.c.l.b16 %v43
    %v60 = vunpack.c.l.b16 %v44
    %v61 = vpack.c.b16 %v60, %v59
    %vm63 = vcmask 130048
    %v65 = vsel %vm63, %v56, 0
    %67 = vmatprep.subr.bf16.mxu0 0
    %68 = vmatpush1.bf16.msra.mxu0 %v61
    %69 = vmatprep.subr.bf16.mxu0 0
    %70 = vmatpush1.bf16.msra.mxu0 0
    %71 = vmatprep.subr.bf16.mxu0 0
    %72 = vmatpush1.bf16.msra.mxu0 0
    %73 = vmatprep.subr.bf16.mxu0 0
    %74 = vmatpush1.bf16.msra.mxu0 0
    %75 = vmatprep.subr.bf16.mxu0 0
    %76 = vmatpush1.bf16.msra.mxu0 0
    %77 = vmatprep.subr.bf16.mxu0 0
    %78 = vmatpush1.bf16.msra.mxu0 0
    %79 = vmatprep.subr.bf16.mxu0 0
    %80 = vmatpush1.bf16.msra.mxu0 0
    %81 = vmatprep.subr.bf16.mxu0 0
    %82 = vmatpush1.bf16.msra.mxu0 0
    %83 = vmatprep.subr.bf16.mxu0 0
    %84 = vmatpush1.bf16.msra.mxu0 0
    %85 = vmatprep.subr.bf16.mxu0 0
    %86 = vmatpush1.bf16.msra.mxu0 0
    %87 = vmatprep.subr.bf16.mxu0 0
    %88 = vmatpush1.bf16.msra.mxu0 0
    %89 = vmatprep.subr.bf16.mxu0 0
    %90 = vmatpush1.bf16.msra.mxu0 0
    %91 = vmatprep.subr.bf16.mxu0 0
    %92 = vmatpush1.bf16.msra.mxu0 0
    %93 = vmatprep.subr.bf16.mxu0 0
    %94 = vmatpush1.bf16.msra.mxu0 0
    %95 = vmatprep.subr.bf16.mxu0 0
    %96 = vmatpush1.bf16.msra.mxu0 0
    %97 = vmatprep.subr.bf16.mxu0 0
    %98 = vmatpush1.bf16.msra.mxu0 0
    %99 = vmatprep.mubr.bf16.mxu0 0
    %100 = vmatmul.mubr.bf16.gmra.mrb[0].mxu0 %v65
    %v101 = vpop.f32.mrb[0].mxu0
    %v102 = vadd.f32 %v50, %v101
    %v103 = vpop.f32.mrb[0].mxu0
    %v104 = vpop.f32.mrb[0].mxu0
    %v105 = vadd.f32 %v50, %v104
    %v106 = vpop.f32.mrb[0].mxu0
    %107 = vdwg.mxu0
    %v108 = vmax.f32 %v102, 0.0
    %v109 = vmax.f32 %v105, 0.0
    %v110 = vpack.c.bf16 %v109, %v108
    %v111 = vld [vmem:[%s3] sm:$0xf]
    %v112 = vld [vmem:[%s3 + $0x4] sm:$0xf]
    %v113 = vld [vmem:[%s3 + $0x8] sm:$0xf]
    %v114 = vld [vmem:[%s3 + $0xc] sm:$0xf]
    %v115 = vld [vmem:[%s3 + $0x10] sm:$0xf]
    %v116 = vld [vmem:[%s3 + $0x14] sm:$0xf]
    %v117 = vld [vmem:[%s3 + $0x18] sm:$0xf]
    %v118 = vld [vmem:[%s3 + $0x1c] sm:$0xf]
    %v119 = vld [vmem:[%s3 + $0x20] sm:$0xf]
    %v120 = vld [vmem:[%s3 + $0x24] sm:$0xf]
    %v121 = vld [vmem:[%s3 + $0x28] sm:$0xf]
    %v122 = vld [vmem:[%s3 + $0x2c] sm:$0xf]
    %v123 = vld [vmem:[%s3 + $0x30] sm:$0xf]
    %v124 = vld [vmem:[%s3 + $0x34] sm:$0xf]
    %v125 = vld [vmem:[%s3 + $0x38] sm:$0xf]
    %v126 = vld [vmem:[%s3 + $0x3c] sm:$0xf]
    %v127 = vld [vmem:[%s4] sm:$0x1]
    %v129 = vlaneseq
    %v130 = vshrl.u32 %v129, 7
    %v131 = vsub.s32 0, %v130
    %v132 = vrot.slane %v127, %v131
    %v150 = vunpack.c.l.b16 %v111
    %v151 = vunpack.c.l.b16 %v112
    %v152 = vunpack.c.l.b16 %v113
    %v153 = vunpack.c.l.b16 %v114
    %v154 = vunpack.c.l.b16 %v115
    %v155 = vunpack.c.l.b16 %v116
    %v156 = vunpack.c.l.b16 %v117
    %v157 = vunpack.c.l.b16 %v118
    %v158 = vunpack.c.l.b16 %v119
    %v159 = vunpack.c.l.b16 %v120
    %v160 = vunpack.c.l.b16 %v121
    %v161 = vunpack.c.l.b16 %v122
    %v162 = vunpack.c.l.b16 %v123
    %v163 = vunpack.c.l.b16 %v124
    %v164 = vunpack.c.l.b16 %v125
    %v165 = vunpack.c.l.b16 %v126
    %v166 = vpack.c.b16 %v151, %v150
    %v167 = vpack.c.b16 %v153, %v152
    %v168 = vpack.c.b16 %v155, %v154
    %v169 = vpack.c.b16 %v157, %v156
    %v170 = vpack.c.b16 %v159, %v158
    %v171 = vpack.c.b16 %v161, %v160
    %v172 = vpack.c.b16 %v163, %v162
    %v173 = vpack.c.b16 %v165, %v164
    %182 = vmatprep.subr.bf16.mxu0 0
    %183 = vmatpush1.bf16.msra.mxu0 %v166
    %184 = vmatprep.subr.bf16.mxu0 0
    %185 = vmatpush1.bf16.msra.mxu0 %v167
    %186 = vmatprep.subr.bf16.mxu0 0
    %187 = vmatpush1.bf16.msra.mxu0 %v168
    %188 = vmatprep.subr.bf16.mxu0 0
    %189 = vmatpush1.bf16.msra.mxu0 %v169
    %190 = vmatprep.subr.bf16.mxu0 0
    %191 = vmatpush1.bf16.msra.mxu0 %v170
    %192 = vmatprep.subr.bf16.mxu0 0
    %193 = vmatpush1.bf16.msra.mxu0 %v171
    %194 = vmatprep.subr.bf16.mxu0 0
    %195 = vmatpush1.bf16.msra.mxu0 %v172
    %196 = vmatprep.subr.bf16.mxu0 0
    %197 = vmatpush1.bf16.msra.mxu0 %v173
    %198 = vmatprep.subr.bf16.mxu0 0
    %199 = vmatpush1.bf16.msra.mxu0 0
    %200 = vmatprep.subr.bf16.mxu0 0
    %201 = vmatpush1.bf16.msra.mxu0 0
    %202 = vmatprep.subr.bf16.mxu0 0
    %203 = vmatpush1.bf16.msra.mxu0 0
    %204 = vmatprep.subr.bf16.mxu0 0
    %205 = vmatpush1.bf16.msra.mxu0 0
    %206 = vmatprep.subr.bf16.mxu0 0
    %207 = vmatpush1.bf16.msra.mxu0 0
    %208 = vmatprep.subr.bf16.mxu0 0
    %209 = vmatpush1.bf16.msra.mxu0 0
    %210 = vmatprep.subr.bf16.mxu0 0
    %211 = vmatpush1.bf16.msra.mxu0 0
    %212 = vmatprep.subr.bf16.mxu0 0
    %213 = vmatpush1.bf16.msra.mxu0 0
    %214 = vmatprep.mubr.bf16.mxu0 0
    %215 = vmatmul.mubr.bf16.gmra.mrb[0].mxu0 %v110
    %v216 = vpop.f32.mrb[0].mxu0
    %v217 = vadd.f32 %v132, %v216
    %v218 = vpop.f32.mrb[0].mxu0
    %v219 = vpop.f32.mrb[0].mxu0
    %v220 = vadd.f32 %v132, %v219
    %v221 = vpop.f32.mrb[0].mxu0
    %222 = vdwg.mxu0
    %v223 = vmax.f32 %v217, 0.0
    %v224 = vmax.f32 %v220, 0.0
    %v225 = vpack.c.bf16 %v224, %v223
    %v226 = vld [vmem:[%s5] sm:$0xf]
    %v227 = vld [vmem:[%s5 + $0x4] sm:$0xf]
    %v228 = vld [vmem:[%s5 + $0x8] sm:$0xf]
    %v229 = vld [vmem:[%s5 + $0xc] sm:$0xf]
    %v230 = vld [vmem:[%s5 + $0x10] sm:$0xf]
    %v231 = vld [vmem:[%s5 + $0x14] sm:$0xf]
    %v232 = vld [vmem:[%s5 + $0x18] sm:$0xf]
    %v233 = vld [vmem:[%s5 + $0x1c] sm:$0xf]
    %v234 = vld [vmem:[%s5 + $0x20] sm:$0xf]
    %v235 = vld [vmem:[%s5 + $0x24] sm:$0xf]
    %v236 = vld [vmem:[%s5 + $0x28] sm:$0xf]
    %v237 = vld [vmem:[%s5 + $0x2c] sm:$0xf]
    %v238 = vld [vmem:[%s5 + $0x30] sm:$0xf]
    %v239 = vld [vmem:[%s5 + $0x34] sm:$0xf]
    %v240 = vld [vmem:[%s5 + $0x38] sm:$0xf]
    %v241 = vld [vmem:[%s5 + $0x3c] sm:$0xf]
    %v242 = vld [vmem:[%s6] sm:$0x1]
    %v244 = vlaneseq
    %v245 = vshrl.u32 %v244, 7
    %v246 = vsub.s32 0, %v245
    %v247 = vrot.slane %v242, %v246
    %v265 = vunpack.c.l.b16 %v226
    %v266 = vunpack.c.l.b16 %v227
    %v267 = vunpack.c.l.b16 %v228
    %v268 = vunpack.c.l.b16 %v229
    %v269 = vunpack.c.l.b16 %v230
    %v270 = vunpack.c.l.b16 %v231
    %v271 = vunpack.c.l.b16 %v232
    %v272 = vunpack.c.l.b16 %v233
    %v273 = vunpack.c.l.b16 %v234
    %v274 = vunpack.c.l.b16 %v235
    %v275 = vunpack.c.l.b16 %v236
    %v276 = vunpack.c.l.b16 %v237
    %v277 = vunpack.c.l.b16 %v238
    %v278 = vunpack.c.l.b16 %v239
    %v279 = vunpack.c.l.b16 %v240
    %v280 = vunpack.c.l.b16 %v241
    %v281 = vpack.c.b16 %v266, %v265
    %v282 = vpack.c.b16 %v268, %v267
    %v283 = vpack.c.b16 %v270, %v269
    %v284 = vpack.c.b16 %v272, %v271
    %v285 = vpack.c.b16 %v274, %v273
    %v286 = vpack.c.b16 %v276, %v275
    %v287 = vpack.c.b16 %v278, %v277
    %v288 = vpack.c.b16 %v280, %v279
    %297 = vmatprep.subr.bf16.mxu0 0
    %298 = vmatpush1.bf16.msra.mxu0 %v281
    %299 = vmatprep.subr.bf16.mxu0 0
    %300 = vmatpush1.bf16.msra.mxu0 %v282
    %301 = vmatprep.subr.bf16.mxu0 0
    %302 = vmatpush1.bf16.msra.mxu0 %v283
    %303 = vmatprep.subr.bf16.mxu0 0
    %304 = vmatpush1.bf16.msra.mxu0 %v284
    %305 = vmatprep.subr.bf16.mxu0 0
    %306 = vmatpush1.bf16.msra.mxu0 %v285
    %307 = vmatprep.subr.bf16.mxu0 0
    %308 = vmatpush1.bf16.msra.mxu0 %v286
    %309 = vmatprep.subr.bf16.mxu0 0
    %310 = vmatpush1.bf16.msra.mxu0 %v287
    %311 = vmatprep.subr.bf16.mxu0 0
    %312 = vmatpush1.bf16.msra.mxu0 %v288
    %313 = vmatprep.subr.bf16.mxu0 0
    %314 = vmatpush1.bf16.msra.mxu0 0
    %315 = vmatprep.subr.bf16.mxu0 0
    %316 = vmatpush1.bf16.msra.mxu0 0
    %317 = vmatprep.subr.bf16.mxu0 0
    %318 = vmatpush1.bf16.msra.mxu0 0
    %319 = vmatprep.subr.bf16.mxu0 0
    %320 = vmatpush1.bf16.msra.mxu0 0
    %321 = vmatprep.subr.bf16.mxu0 0
    %322 = vmatpush1.bf16.msra.mxu0 0
    %323 = vmatprep.subr.bf16.mxu0 0
    %324 = vmatpush1.bf16.msra.mxu0 0
    %325 = vmatprep.subr.bf16.mxu0 0
    %326 = vmatpush1.bf16.msra.mxu0 0
    %327 = vmatprep.subr.bf16.mxu0 0
    %328 = vmatpush1.bf16.msra.mxu0 0
    %329 = vmatprep.mubr.bf16.mxu0 0
    %330 = vmatmul.mubr.bf16.gmra.mrb[0].mxu0 %v225
    %v331 = vpop.f32.mrb[0].mxu0
    %v332 = vadd.f32 %v247, %v331
    %v333 = vpop.f32.mrb[0].mxu0
    %v334 = vpop.f32.mrb[0].mxu0
    %v335 = vadd.f32 %v247, %v334
    %v336 = vpop.f32.mrb[0].mxu0
    %337 = vdwg.mxu0
    %v338 = vtanh.pop %v332
    %v339 = vtanh.pop %v335
    %vm340 = vcmask 64512
    %341 = vst.msk [vmem:[%s7] sm:$0xff] %vm340, %v338
    %342 = vst.msk [vmem:[%s7 + $0x8] sm:$0xff] %vm340, %v339
    // Predicated region
    $region34: #{tpu_custom_call.1} parent=1 // pred_check
      _
    $region35: #{tpu_custom_call.1} parent=1 // pred_check_branch
      %344 = sbr.rel (0) target = $region37
    $region36: #{tpu_custom_call.1} parent=1 // pred_region
      _
    $region37: #{tpu_custom_call.1} parent=1 // pred_fallthru
      _
    // Predicated region
    $region38: #{tpu_custom_call.1} parent=1 // pred_check
      _
    $region39: #{tpu_custom_call.1} parent=1 // pred_check_branch
      %346 = sbr.rel (0) target = $region41
    $region40: #{tpu_custom_call.1} parent=1 // pred_region
      _
    $region41: #{tpu_custom_call.1} parent=1 // pred_fallthru
      _
    %347 = vsyncpa [#allocation3], 1

</llo_original>
